<compile_context>
chip_gen: v7x
topology: tpu7x:2x2x1
jax: 0.10.0
libtpu: 0.0.40
codegen_flags: <defaults>
</compile_context>

<pallas_src>
import jax
import jax.numpy as jnp
import numpy as np
from jax import lax
from jax.experimental import pallas as pl
from jax.experimental.pallas import tpu as pltpu


# ----------------------------------------------------------------------------- helpers
def _round_up(v, m):
    return -(-v // m) * m


def _cdiv(a, b):
    return -(-a // b)


def _vmem_capacity_bytes():
    try:
        return int(pltpu.get_tpu_info().vmem_capacity_bytes)
    except Exception:
        return 64 * 2**20  # conservative (v7x per-TensorCore) fallback


def _padded_dims(C, itemsize):
    sublane = 8 * max(1, 4 // itemsize)          # 8 (f32) / 16 (bf16) / 32 (int8)
    return _round_up(C, sublane), _round_up(C, 128)


def _fused_vmem_bytes(bt, C, N, itemsize, mm_itemsize, epi_chunk):
    c_sub, c_lane = _padded_dims(C, itemsize)
    n_pad = _round_up(N, 128)
    io = bt * c_sub * n_pad * itemsize
    pipeline = 2 * 2 * io                                        # double-buffered in + out blocks
    x_live = io + (bt * c_sub * n_pad * mm_itemsize if mm_itemsize != itemsize else 0)
    cc = bt * c_sub * c_lane * 4                                 # energy / p / attn (f32)
    chunk = min(_round_up(max(epi_chunk, 128), 128), n_pad)
    epi = bt * c_sub * chunk * (8 + mm_itemsize)                 # f32 chunk out + residual + cast
    return pipeline + x_live + 3 * cc + epi


def _pick_bt(B, C, N, itemsize, mm_itemsize, epi_chunk, budget):
    for bt in sorted((d for d in range(1, B + 1) if B % d == 0), reverse=True):
        if _fused_vmem_bytes(bt, C, N, itemsize, mm_itemsize, epi_chunk) <= budget:
            return bt
    return 0  # nothing fits -> two-pass path


def _pass1_bytes(C, tn, itemsize, mm_itemsize):
    c_sub, c_lane = _padded_dims(C, itemsize)
    xin = c_sub * _round_up(tn, 128)
    return (2 * xin * itemsize                      # double-buffered x tile
            + xin * max(itemsize, mm_itemsize)      # masked / cast copy
            + 2 * c_sub * c_lane * 4                # double-buffered attn out (f32)
            + 3 * c_sub * c_lane * 4)               # acc scratch + softmax temporaries


def _pass2_bytes(C, tn, itemsize, mm_itemsize):
    c_sub, c_lane = _padded_dims(C, itemsize)
    xin = c_sub * _round_up(tn, 128)
    return (2 * c_sub * c_lane * 4                  # double-buffered attn in (f32)
            + c_sub * c_lane * mm_itemsize          # attn cast copy
            + 2 * xin * itemsize                    # double-buffered x tile
            + 2 * xin * itemsize                    # double-buffered out tile
            + xin * (4 + mm_itemsize))              # f32 matmul result + cast copy


# ----------------------------------------------------------------------------- fused kernel
def _make_fused_kernel(C, N, mm_dtype, epi_chunk):
    # Lane-aligned (multiple-of-128) static chunk boundaries for the epilogue.
    n_chunks = max(1, _cdiv(N, max(128, epi_chunk)))
    chunk = _round_up(_cdiv(N, n_chunks), 128)
    bounds = []
    lo = 0
    while lo < N:
        hi = min(lo + chunk, N)
        bounds.append((lo, hi))
        lo = hi

    def kernel(gamma_ref, x_ref, o_ref):
        gamma = gamma_ref[0]

        # gamma == 0 (the nn.Parameter(torch.zeros(1)) init): output == input exactly.
        @pl.when(gamma == 0.0)
        def _():
            o_ref[...] = x_ref[...]

        @pl.when(gamma != 0.0)
        def _():
            x = x_ref[...]                                   # (Bt, C, N), native dtype
            xm = x if x.dtype == mm_dtype else x.astype(mm_dtype)
            # energy[b, i, j] = sum_n x[b, i, n] * x[b, j, n]   (no transpose relayout)
            energy = lax.dot_general(
                xm, xm,
                dimension_numbers=(((2,), (2,)), ((0,), (0,))),
                preferred_element_type=jnp.float32)
            # softmax(rowmax(E) - E) == exp(rowmin(E) - E) / rowsum : one reduction,
            # exact division (the approx reciprocal caused ~2^-8 errors previously).
            m = jnp.min(energy, axis=-1, keepdims=True)
            p = jnp.exp(m - energy)
            attn = (p / jnp.sum(p, axis=-1, keepdims=True)).astype(mm_dtype)

            if len(bounds) == 1:
                out = lax.dot_general(
                    attn, xm,
                    dimension_numbers=(((2,), (1,)), ((0,), (0,))),
                    preferred_element_type=jnp.float32)
                o_ref[...] = (gamma * out + x.astype(jnp.float32)).astype(o_ref.dtype)
            else:
                # Stream the second matmul + residual over lane-aligned N chunks so the
                # f32 temporaries stay small (keeps the fused path inside VMEM).
                for lo_, hi_ in bounds:
                    xc = xm[:, :, lo_:hi_]
                    oc = lax.dot_general(
                        attn, xc,
                        dimension_numbers=(((2,), (1,)), ((0,), (0,))),
                        preferred_element_type=jnp.float32)
                    o_ref[:, :, lo_:hi_] = (
                        gamma * oc + x[:, :, lo_:hi_].astype(jnp.float32)
                    ).astype(o_ref.dtype)

    return kernel


def _cam_fused(x_flat, gamma, bt, mm_dtype, epi_chunk, est_bytes, capacity):
    B, C, N = x_flat.shape
    vmem_limit = int(min(capacity * 9 // 10, max(est_bytes * 3 // 2, 32 * 2**20)))
    return pl.pallas_call(
        _make_fused_kernel(C, N, mm_dtype, epi_chunk),
        out_shape=jax.ShapeDtypeStruct((B, C, N), x_flat.dtype),
        grid_spec=pltpu.PrefetchScalarGridSpec(
            num_scalar_prefetch=0,
            grid=(B // bt,),
            in_specs=[
                pl.BlockSpec(memory_space=pltpu.SMEM),              # gamma (1,)
                pl.BlockSpec((bt, C, N), lambda b: (b, 0, 0)),      # full trailing dims
            ],
            out_specs=pl.BlockSpec((bt, C, N), lambda b: (b, 0, 0)),
        ),
        compiler_params=pltpu.CompilerParams(
            dimension_semantics=("parallel",),
            vmem_limit_bytes=vmem_limit,
        ),
    )(gamma, x_flat)


# ----------------------------------------------------------------------------- two-pass kernels
def _make_attn_kernel(N, tn, mm_dtype):
    needs_mask = (N % tn) != 0   # last tile partial -> mask out-of-range columns

    def kernel(x_ref, attn_ref, acc_ref):
        k = pl.program_id(1)

        @pl.when(k == 0)
        def _():
            acc_ref[...] = jnp.zeros_like(acc_ref)

        x = x_ref[0]                                     # (C, tn), native dtype
        if x.dtype != mm_dtype:
            x = x.astype(mm_dtype)
        if needs_mask:
            col = lax.broadcasted_iota(jnp.int32, (1, tn), 1) + k * tn
            x = jnp.where(col < N, x, jnp.zeros_like(x))
        acc_ref[...] += lax.dot_general(
            x, x, dimension_numbers=(((1,), (1,)), ((), ())),
            preferred_element_type=jnp.float32)

        @pl.when(k == pl.num_programs(1) - 1)
        def _():
            energy = acc_ref[...]
            m = jnp.min(energy, axis=-1, keepdims=True)
            p = jnp.exp(m - energy)
            attn_ref[0] = p / jnp.sum(p, axis=-1, keepdims=True)   # keep attention in f32

    return kernel


def _make_apply_kernel(mm_dtype):
    def kernel(gamma_ref, attn_ref, x_ref, o_ref):
        gamma = gamma_ref[0]

        @pl.when(gamma == 0.0)
        def _():
            o_ref[...] = x_ref[...]

        @pl.when(gamma != 0.0)
        def _():
            attn = attn_ref[0]                           # (C, C), f32
            x = x_ref[0]                                 # (C, tn), native dtype
            a = attn if attn.dtype == mm_dtype else attn.astype(mm_dtype)
            xm = x if x.dtype == mm_dtype else x.astype(mm_dtype)
            out = lax.dot_general(
                a, xm, dimension_numbers=(((1,), (0,)), ((), ())),
                preferred_element_type=jnp.float32)
            o_ref[0] = (gamma * out + x.astype(jnp.float32)).astype(o_ref.dtype)

    return kernel


def _cam_two_pass(x_flat, gamma, n_tile, mm_dtype, capacity):
    B, C, N = x_flat.shape
    itemsize = jnp.dtype(x_flat.dtype).itemsize
    mm_itemsize = jnp.dtype(mm_dtype).itemsize
    budget = capacity * 3 // 4

    # cdiv-based tile: minimal N padding waste, then shrink until it fits VMEM
    # (v7x per-TC capacity is 64 MiB; v5e/v6e are 128 MiB).
    n_lane = _round_up(N, 128)
    num_k = max(1, _cdiv(N, max(128, n_tile)))
    tn = min(_round_up(_cdiv(N, num_k), 128), n_lane)
    while tn > 128 and max(_pass1_bytes(C, tn, itemsize, mm_itemsize),
                           _pass2_bytes(C, tn, itemsize, mm_itemsize)) > budget:
        tn = max(128, _round_up(tn // 2, 128))
    num_k = _cdiv(N, tn)

    limit1 = int(min(capacity * 9 // 10,
                     max(2 * _pass1_bytes(C, tn, itemsize, mm_itemsize), 32 * 2**20)))
    limit2 = int(min(capacity * 9 // 10,
                     max(2 * _pass2_bytes(C, tn, itemsize, mm_itemsize), 32 * 2**20)))

    # Pass 1: energy accumulated over N tiles (reduction axis last) -> f32 attention.
    attn = pl.pallas_call(
        _make_attn_kernel(N, tn, mm_dtype),
        out_shape=jax.ShapeDtypeStruct((B, C, C), jnp.float32),
        grid_spec=pltpu.PrefetchScalarGridSpec(
            num_scalar_prefetch=0,
            grid=(B, num_k),
            in_specs=[pl.BlockSpec((1, C, tn), lambda b, k: (b, 0, k))],
            out_specs=pl.BlockSpec((1, C, C), lambda b, k: (b, 0, 0)),
            scratch_shapes=[pltpu.VMEM((C, C), jnp.float32)],
        ),
        compiler_params=pltpu.CompilerParams(
            dimension_semantics=("parallel", "arbitrary"),
            vmem_limit_bytes=limit1,
        ),
    )(x_flat)

    # Pass 2: out = gamma * (attention @ x) + x, tile by tile over N (no padding;
    # out-of-bounds columns of a partial last tile are clipped on writeback).
    return pl.pallas_call(
        _make_apply_kernel(mm_dtype),
        out_shape=jax.ShapeDtypeStruct((B, C, N), x_flat.dtype),
        grid_spec=pltpu.PrefetchScalarGridSpec(
            num_scalar_prefetch=0,
            grid=(B, num_k),
            in_specs=[
                pl.BlockSpec(memory_space=pltpu.SMEM),              # gamma (1,)
                pl.BlockSpec((1, C, C), lambda b, j: (b, 0, 0)),
                pl.BlockSpec((1, C, tn), lambda b, j: (b, 0, j)),
            ],
            out_specs=pl.BlockSpec((1, C, tn), lambda b, j: (b, 0, j)),
        ),
        compiler_params=pltpu.CompilerParams(
            dimension_semantics=("parallel", "parallel"),
            vmem_limit_bytes=limit2,
        ),
    )(gamma, attn, x_flat)


# ----------------------------------------------------------------------------- public wrapper
def cam_module(x, gamma, *, force_two_pass=False, n_tile=2048, epi_chunk=2048,
               matmul_dtype=None):
    """CAM_Module forward. x: (B, C, H, W); gamma: scalar / (1,) parameter.

    matmul_dtype: optionally run the two MXU contractions in this dtype (e.g.
    jnp.bfloat16) with f32 accumulation.  Default None keeps the input dtype.
    """
    B, C, H, W = x.shape
    N = H * W
    x_flat = x.reshape(B, C, N)                       # metadata-only reshape, no copy
    gamma = jnp.asarray(gamma, jnp.float32).reshape(1)

    mm_dtype = jnp.dtype(matmul_dtype) if matmul_dtype is not None else jnp.dtype(x.dtype)
    itemsize = jnp.dtype(x.dtype).itemsize
    mm_itemsize = jnp.dtype(mm_dtype).itemsize

    capacity = _vmem_capacity_bytes()
    budget = capacity * 3 // 4                        # headroom for pipelining / scratch
    bt = 0 if force_two_pass else _pick_bt(B, C, N, itemsize, mm_itemsize, epi_chunk, budget)

    if bt > 0:
        est = _fused_vmem_bytes(bt, C, N, itemsize, mm_itemsize, epi_chunk)
        out = _cam_fused(x_flat, gamma, bt, mm_dtype, epi_chunk, est, capacity)
    else:
        out = _cam_two_pass(x_flat, gamma, n_tile, mm_dtype, capacity)
    return out.reshape(B, C, H, W)


# ----------------------------------------------------------------------------- reference
def cam_reference(x, gamma):
    """Pure-JAX reference matching the PyTorch forward exactly (f32, highest precision)."""
    B, C, H, W = x.shape
    xf = x.reshape(B, C, H * W).astype(jnp.float32)
    energy = jnp.einsum("bcn,bdn->bcd", xf, xf, precision=lax.Precision.HIGHEST)
    e_new = jnp.max(energy, axis=-1, keepdims=True) - energy
    attn = jax.nn.softmax(e_new, axis=-1)
    out = jnp.einsum("bcd,bdn->bcn", attn, xf,
                     precision=lax.Precision.HIGHEST).reshape(B, C, H, W)
    return (jnp.asarray(gamma, jnp.float32).reshape(()) * out
            + x.astype(jnp.float32)).astype(x.dtype)


if __name__ == "__main__":
    k1, k2 = jax.random.split(jax.random.PRNGKey(0))
    B, C, H, W = 2, 4, 16, 16
    x = jax.random.normal(k1, (B, C, H, W), dtype=jnp.float32)

    # gamma = 0 (the nn.Parameter(torch.zeros(1)) init): exact residual copy path.
    gamma0 = jnp.zeros((1,), jnp.float32)
    out0 = jax.block_until_ready(cam_module(x, gamma0))
    np.testing.assert_allclose(np.asarray(out0), np.asarray(x), rtol=1e-6, atol=1e-6)

    # Nonzero gamma: fused path (unpadded blocks, exact-division softmax).
    gamma1 = jnp.array([0.5], jnp.float32)
    ref1 = cam_reference(x, gamma1)
    out1 = jax.block_until_ready(cam_module(x, gamma1))
    np.testing.assert_allclose(np.asarray(out1), np.asarray(ref1), rtol=5e-3, atol=5e-3)

    # Tiled two-pass path (used when the fused block would exceed VMEM, e.g. v7x at
    # production C/N); small n_tile forces a multi-step N reduction.
    out2 = jax.block_until_ready(cam_module(x, gamma1, force_two_pass=True, n_tile=128))
    np.testing.assert_allclose(np.asarray(out2), np.asarray(ref1), rtol=5e-3, atol=5e-3)

    # Shape with N not a lane multiple (10x10=100) and C a sublane multiple:
    # exercises full-trailing-dim blocks with internal Mosaic padding.
    x2 = jax.random.normal(k2, (2, 8, 10, 10), dtype=jnp.float32)
    gamma2 = jnp.array([0.3], jnp.float32)
    ref3 = cam_reference(x2, gamma2)
    out3 = jax.block_until_ready(cam_module(x2, gamma2))
    np.testing.assert_allclose(np.asarray(out3), np.asarray(ref3), rtol=5e-3, atol=5e-3)

    print("KERNEL_OK")
</pallas_src>

<mosaic_0001>
module attributes {stable_mosaic.version = 11 : i64} {
  func.func @kernel(%arg0: i32, %arg1: memref<1xf32, #tpu.memory_space<smem>>, %arg2: memref<2x4x256xf32, #tpu.memory_space<vmem>>, %arg3: memref<2x4x256xf32, #tpu.memory_space<vmem>>) attributes {dimension_semantics = [#tpu.dimension_semantics<parallel>], iteration_bounds = array<i64: 1>, scalar_prefetch = 0 : i64, scratch_operands = 0 : i64, tpu.core_type = #tpu.core_type<tc>, window_params = [{transform_indices = @transform_0, window_bounds = array<i64: 1>}, {transform_indices = @transform_1, window_bounds = array<i64: 2, 4, 256>}, {transform_indices = @transform_2, window_bounds = array<i64: 2, 4, 256>}]} {
    %c0 = arith.constant 0 : index
    %0 = memref.load %arg1[%c0] : memref<1xf32, #tpu.memory_space<smem>>
    %cst = arith.constant 0.000000e+00 : f32
    %1 = arith.cmpf oeq, %0, %cst : f32
    %2 = arith.extui %1 : i1 to i32
    %c0_i32 = arith.constant 0 : i32
    %3 = arith.cmpi ne, %2, %c0_i32 : i32
    scf.if %3 {
      %c0_2 = arith.constant 0 : index
      %c0_3 = arith.constant 0 : index
      %c0_4 = arith.constant 0 : index
      %7 = vector.load %arg2[%c0_2, %c0_3, %c0_4] : memref<2x4x256xf32, #tpu.memory_space<vmem>>, vector<2x4x256xf32>
      %c0_5 = arith.constant 0 : index
      %c0_6 = arith.constant 0 : index
      %c0_7 = arith.constant 0 : index
      %8 = vector.load %arg3[%c0_5, %c0_6, %c0_7] : memref<2x4x256xf32, #tpu.memory_space<vmem>>, vector<2x4x256xf32>
      tpu.vector_store %arg3[%c0_5, %c0_6, %c0_7], %7 {strides = array<i32>} : memref<2x4x256xf32, #tpu.memory_space<vmem>>, vector<2x4x256xf32>,
    } else {
    }
    %cst_0 = arith.constant 0.000000e+00 : f32
    %4 = arith.cmpf one, %0, %cst_0 : f32
    %5 = arith.extui %4 : i1 to i32
    %c0_i32_1 = arith.constant 0 : i32
    %6 = arith.cmpi ne, %5, %c0_i32_1 : i32
    scf.if %6 {
      %c0_2 = arith.constant 0 : index
      %c0_3 = arith.constant 0 : index
      %c0_4 = arith.constant 0 : index
      %7 = vector.load %arg2[%c0_2, %c0_3, %c0_4] : memref<2x4x256xf32, #tpu.memory_space<vmem>>, vector<2x4x256xf32>
      %cst_5 = arith.constant dense<0.000000e+00> : vector<2x4x4xf32>
      %8 = tpu.matmul %7, %7, %cst_5 {dimension_numbers = #tpu.dot_dimension_numbers<[2], [2], [1], [1], [0, 0, 0, 1, 1, 1], [0], [0]>} : vector<2x4x256xf32>, vector<2x4x256xf32>, vector<2x4x4xf32> -> vector<2x4x4xf32>
      %cst_6 = arith.constant dense<0x7F800000> : vector<2x4xf32>
      %9 = vector.multi_reduction <minimumf>, %8, %cst_6 [2] : vector<2x4x4xf32> to vector<2x4xf32>
      %10 = vector.shape_cast %9 : vector<2x4xf32> to vector<2x4x1xf32>
      %11 = vector.broadcast %10 : vector<2x4x1xf32> to vector<2x4x4xf32>
      %12 = arith.subf %11, %8 : vector<2x4x4xf32>
      %13 = math.exp %12 : vector<2x4x4xf32>
      %cst_7 = arith.constant dense<0.000000e+00> : vector<2x4xf32>
      %14 = vector.multi_reduction <add>, %13, %cst_7 [2] : vector<2x4x4xf32> to vector<2x4xf32>
      %15 = vector.shape_cast %14 : vector<2x4xf32> to vector<2x4x1xf32>
      %16 = vector.broadcast %15 : vector<2x4x1xf32> to vector<2x4x4xf32>
      %17 = arith.divf %13, %16 : vector<2x4x4xf32>
      %cst_8 = arith.constant dense<0.000000e+00> : vector<2x4x256xf32>
      %18 = tpu.matmul %17, %7, %cst_8 {dimension_numbers = #tpu.dot_dimension_numbers<[2], [1], [1], [2], [0, 0, 0, 1, 1, 2], [0], [0]>} : vector<2x4x4xf32>, vector<2x4x256xf32>, vector<2x4x256xf32> -> vector<2x4x256xf32>
      %19 = vector.broadcast %0 : f32 to vector<2x4x256xf32>
      %20 = arith.mulf %19, %18 : vector<2x4x256xf32>
      %21 = arith.addf %20, %7 : vector<2x4x256xf32>
      %c0_9 = arith.constant 0 : index
      %c0_10 = arith.constant 0 : index
      %c0_11 = arith.constant 0 : index
      %22 = vector.load %arg3[%c0_9, %c0_10, %c0_11] : memref<2x4x256xf32, #tpu.memory_space<vmem>>, vector<2x4x256xf32>
      tpu.vector_store %arg3[%c0_9, %c0_10, %c0_11], %21 {strides = array<i32>} : memref<2x4x256xf32, #tpu.memory_space<vmem>>, vector<2x4x256xf32>,
    } else {
    }
    return
  }
  func.func @transform_0(%arg0: i32) -> i32 {
    %c0_i32 = arith.constant 0 : i32
    %c0_i32_0 = arith.constant 0 : i32
    return %c0_i32 : i32
  }
  func.func @transform_1(%arg0: i32) -> (i32, i32, i32) {
    %c0_i32 = arith.constant 0 : i32
    %c0_i32_0 = arith.constant 0 : i32
    %c0_i32_1 = arith.constant 0 : i32
    return %arg0, %c0_i32, %c0_i32_0 : i32, i32, i32
  }
  func.func @transform_2(%arg0: i32) -> (i32, i32, i32) {
    %c0_i32 = arith.constant 0 : i32
    %c0_i32_0 = arith.constant 0 : i32
    %c0_i32_1 = arith.constant 0 : i32
    return %arg0, %c0_i32, %c0_i32_0 : i32, i32, i32
  }
}

</mosaic_0001>

<llo_original>
// kernel: tpu_custom_call.1
$region0: #{tpu_custom_call.1}
  #allocation0 [shape = 'u32[]', space=smem, size = 0x4, offset = 0x4, fixed_abs, tag = 'smem constant byte address 0x4 - core index']
  #allocation1 [shape = 'u32[144,128]{1,0:T(1,128)}', space=vmem, size = 0x12000, scoped, tag = 'internal scratch']
  #allocation2 [shape = 'f32[1]{0:T(128)S(6)}', space=smem, size = 0x200, scoped, tag = 'scoped memory for tpu_custom_call.1']
  %s0 = inlined_call_operand.<no memory space> [shape: f32[1], index: 0, kind: input, shape index: {}]
  %s1 = inlined_call_operand.hbm [shape: f32[2,4,256], index: 1, kind: input, shape index: {}]
  %s2 = inlined_call_operand.hbm [shape: f32[2,4,256], index: 2, kind: output, shape index: {}]
  %s3 = sld [smem:[#allocation0]]
  $region30: #{tpu_custom_call.1} parent=0
    _
  %s5 = ssub.s32 1, %s3
  %s6 = scalar_select 0, %s5, %s3
  %7 = sst [smem:[#allocation2]] %s0
  $region1: #{tpu_custom_call.1} parent=0
    #allocation3 [shape = 'u8[8192]{0}', space=vmem, size = 0x2000, scoped, tag = 'input window, operand 1, single buffered']
    #allocation4 [shape = 's32[1]{0}', space=sflag, size = 0x4, scoped, tag = 'scoped memory for tpu_custom_call.1']
    #allocation5 [shape = 's32[1]{0}', space=sflag, size = 0x4, scoped, tag = 'scoped memory for tpu_custom_call.1']
    #allocation6 [shape = 'u8[8192]{0}', space=vmem, size = 0x2000, scoped, tag = 'output window, operand 0, single buffered']
    %8 = vsyncpa [#allocation4], 0
    %9 = vsyncpa [#allocation5], 0
    // Predicated region
    $region2: #{tpu_custom_call.1} parent=1 // pred_check
      _
    $region3: #{tpu_custom_call.1} parent=1 // pred_check_branch
      %11 = sbr.rel (0) target = $region5
    $region4: #{tpu_custom_call.1} parent=1 // pred_region
      _
    $region5: #{tpu_custom_call.1} parent=1 // pred_fallthru
      _
    // Predicated region
    $region6: #{tpu_custom_call.1} parent=1 // pred_check
      _
    $region7: #{tpu_custom_call.1} parent=1 // pred_check_branch
      %13 = sbr.rel (0) target = $region9
    $region8: #{tpu_custom_call.1} parent=1 // pred_region
      %s15 = ssub.s32 256, 256
      %16 = vsyncadd [#allocation4], %s15
      %s17 = sshll.u32 [#allocation3], 4
      %s18 = int_to_ptr.vmem [resolvable:$true] %s17
      %23 = dma.hbm_to_vmem [thread:$0]  %s1, 256, %s18, [#allocation4], 128, 128, 8
    $region9: #{tpu_custom_call.1} parent=1 // pred_fallthru
      _
    // Predicated region
    $region10: #{tpu_custom_call.1} parent=1 // pred_check
      _
    $region11: #{tpu_custom_call.1} parent=1 // pred_check_branch
      %25 = sbr.rel (0) target = $region13
    $region12: #{tpu_custom_call.1} parent=1 // pred_region
      %26 = dma.done [#allocation4], 256
    $region13: #{tpu_custom_call.1} parent=1 // pred_fallthru
      _
    %s27 = sld [smem:[#allocation2]]
    %p28 = scmp.eq.f32.partialorder %s27, 0.0
    // Predicated region
    $region14: #{tpu_custom_call.1} parent=1 // pred_check
      %p29 = pneg %p28
    $region15: #{tpu_custom_call.1} parent=1 // pred_check_branch
      %31 = sbr.rel (%p29) target = $region17
    $region16: #{tpu_custom_call.1} parent=1 // pred_region
      %v32 = vld [vmem:[#allocation3] sm:$0xff]
      %v33 = vld [vmem:[#allocation3 + $0x8] sm:$0xff]
      %34 = vst [vmem:[#allocation6] sm:$0xff] %v32
      %35 = vst [vmem:[#allocation6 + $0x8] sm:$0xff] %v33
    $region17: #{tpu_custom_call.1} parent=1 // pred_fallthru
      _
    %p36 = scmp.ne.f32.partialorder %s27, 0.0
    // Predicated region
    $region18: #{tpu_custom_call.1} parent=1 // pred_check
      %p37 = pneg %p36
    $region19: #{tpu_custom_call.1} parent=1 // pred_check_branch
      %39 = sbr.rel (%p37) target = $region21
    $region20: #{tpu_custom_call.1} parent=1 // pred_region
      %v40 = vld [vmem:[#allocation3] sm:$0xff]
      %v41 = vld [vmem:[#allocation3 + $0x8] sm:$0xff]
      %v43 = vcombine.high %v40, %v40
      %45 = vmatprep.subr.mxu0 %v43
      %46 = vmatpush1.xpose.msra.mxu0 %v40
      %47 = vmatprep.subr.mxu0 0.0
      %48 = vmatpush1.xpose.msra.mxu0 0.0
      %49 = vmatprep.subr.mxu0 0.0
      %50 = vmatpush1.xpose.msra.mxu0 0.0
      %51 = vmatprep.subr.mxu0 0.0
      %52 = vmatpush1.xpose.msra.mxu0 0.0
      %53 = vmatprep.subr.mxu0 0.0
      %54 = vmatpush1.xpose.msra.mxu0 0.0
      %55 = vmatprep.subr.mxu0 0.0
      %56 = vmatpush1.xpose.msra.mxu0 0.0
      %57 = vmatprep.subr.mxu0 0.0
      %58 = vmatpush1.xpose.msra.mxu0 0.0
      %59 = vmatprep.subr.mxu0 0.0
      %60 = vmatpush1.xpose.msra.mxu0 0.0
      %61 = vmatprep.subr.mxu0 0.0
      %62 = vmatpush1.xpose.msra.mxu0 0.0
      %63 = vmatprep.subr.mxu0 0.0
      %64 = vmatpush1.xpose.msra.mxu0 0.0
      %65 = vmatprep.subr.mxu0 0.0
      %66 = vmatpush1.xpose.msra.mxu0 0.0
      %67 = vmatprep.subr.mxu0 0.0
      %68 = vmatpush1.xpose.msra.mxu0 0.0
      %69 = vmatprep.subr.mxu0 0.0
      %70 = vmatpush1.xpose.msra.mxu0 0.0
      %71 = vmatprep.subr.mxu0 0.0
      %72 = vmatpush1.xpose.msra.mxu0 0.0
      %73 = vmatprep.subr.mxu0 0.0
      %74 = vmatpush1.xpose.msra.mxu0 0.0
      %75 = vmatprep.subr.mxu0 0.0
      %76 = vmatpush1.xpose.msra.mxu0 0.0
      %77 = vmatprep.subr.mxu0 0.0
      %78 = vmatpush1.xpose.msra.mxu0 0.0
      %79 = vmatprep.subr.mxu0 0.0
      %80 = vmatpush1.xpose.msra.mxu0 0.0
      %81 = vmatprep.subr.mxu0 0.0
      %82 = vmatpush1.xpose.msra.mxu0 0.0
      %83 = vmatprep.subr.mxu0 0.0
      %84 = vmatpush1.xpose.msra.mxu0 0.0
      %85 = vmatprep.subr.mxu0 0.0
      %86 = vmatpush1.xpose.msra.mxu0 0.0
      %87 = vmatprep.subr.mxu0 0.0
      %88 = vmatpush1.xpose.msra.mxu0 0.0
      %89 = vmatprep.subr.mxu0 0.0
      %90 = vmatpush1.xpose.msra.mxu0 0.0
      %91 = vmatprep.subr.mxu0 0.0
      %92 = vmatpush1.xpose.msra.mxu0 0.0
      %93 = vmatprep.subr.mxu0 0.0
      %94 = vmatpush1.xpose.msra.mxu0 0.0
      %95 = vmatprep.subr.mxu0 0.0
      %96 = vmatpush1.xpose.msra.mxu0 0.0
      %97 = vmatprep.subr.mxu0 0.0
      %98 = vmatpush1.xpose.msra.mxu0 0.0
      %99 = vmatprep.subr.mxu0 0.0
      %100 = vmatpush1.xpose.msra.mxu0 0.0
      %101 = vmatprep.subr.mxu0 0.0
      %102 = vmatpush1.xpose.msra.mxu0 0.0
      %103 = vmatprep.subr.mxu0 0.0
      %104 = vmatpush1.xpose.msra.mxu0 0.0
      %105 = vmatprep.subr.mxu0 0.0
      %106 = vmatpush1.xpose.msra.mxu0 0.0
      %107 = vmatprep.subr.mxu0 0.0
      %108 = vmatpush1.xpose.msra.mxu0 0.0
      %109 = vmatprep.mubr.f32.mxu0 %v43
      %110 = vmatmul.mubr.f32.gmra.mrb[0].mxu0 %v40
      %v111 = vpop.f32.mrb[0].mxu0
      %v112 = vadd.f32 0.0, %v111
      %v113 = vpop.f32.mrb[0].mxu0
      %114 = vdwg.mxu0
      %v116 = vcombine.high %v41, %v41
      %118 = vmatprep.subr.mxu0 %v116
      %119 = vmatpush1.xpose.msra.mxu0 %v41
      %120 = vmatprep.subr.mxu0 0.0
      %121 = vmatpush1.xpose.msra.mxu0 0.0
      %122 = vmatprep.subr.mxu0 0.0
      %123 = vmatpush1.xpose.msra.mxu0 0.0
      %124 = vmatprep.subr.mxu0 0.0
      %125 = vmatpush1.xpose.msra.mxu0 0.0
      %126 = vmatprep.subr.mxu0 0.0
      %127 = vmatpush1.xpose.msra.mxu0 0.0
      %128 = vmatprep.subr.mxu0 0.0
      %129 = vmatpush1.xpose.msra.mxu0 0.0
      %130 = vmatprep.subr.mxu0 0.0
      %131 = vmatpush1.xpose.msra.mxu0 0.0
      %132 = vmatprep.subr.mxu0 0.0
      %133 = vmatpush1.xpose.msra.mxu0 0.0
      %134 = vmatprep.subr.mxu0 0.0
      %135 = vmatpush1.xpose.msra.mxu0 0.0
      %136 = vmatprep.subr.mxu0 0.0
      %137 = vmatpush1.xpose.msra.mxu0 0.0
      %138 = vmatprep.subr.mxu0 0.0
      %139 = vmatpush1.xpose.msra.mxu0 0.0
      %140 = vmatprep.subr.mxu0 0.0
      %141 = vmatpush1.xpose.msra.mxu0 0.0
      %142 = vmatprep.subr.mxu0 0.0
      %143 = vmatpush1.xpose.msra.mxu0 0.0
      %144 = vmatprep.subr.mxu0 0.0
      %145 = vmatpush1.xpose.msra.mxu0 0.0
      %146 = vmatprep.subr.mxu0 0.0
      %147 = vmatpush1.xpose.msra.mxu0 0.0
      %148 = vmatprep.subr.mxu0 0.0
      %149 = vmatpush1.xpose.msra.mxu0 0.0
      %150 = vmatprep.subr.mxu0 0.0
      %151 = vmatpush1.xpose.msra.mxu0 0.0
      %152 = vmatprep.subr.mxu0 0.0
      %153 = vmatpush1.xpose.msra.mxu0 0.0
      %154 = vmatprep.subr.mxu0 0.0
      %155 = vmatpush1.xpose.msra.mxu0 0.0
      %156 = vmatprep.subr.mxu0 0.0
      %157 = vmatpush1.xpose.msra.mxu0 0.0
      %158 = vmatprep.subr.mxu0 0.0
      %159 = vmatpush1.xpose.msra.mxu0 0.0
      %160 = vmatprep.subr.mxu0 0.0
      %161 = vmatpush1.xpose.msra.mxu0 0.0
      %162 = vmatprep.subr.mxu0 0.0
      %163 = vmatpush1.xpose.msra.mxu0 0.0
      %164 = vmatprep.subr.mxu0 0.0
      %165 = vmatpush1.xpose.msra.mxu0 0.0
      %166 = vmatprep.subr.mxu0 0.0
      %167 = vmatpush1.xpose.msra.mxu0 0.0
      %168 = vmatprep.subr.mxu0 0.0
      %169 = vmatpush1.xpose.msra.mxu0 0.0
      %170 = vmatprep.subr.mxu0 0.0
      %171 = vmatpush1.xpose.msra.mxu0 0.0
      %172 = vmatprep.subr.mxu0 0.0
      %173 = vmatpush1.xpose.msra.mxu0 0.0
      %174 = vmatprep.subr.mxu0 0.0
      %175 = vmatpush1.xpose.msra.mxu0 0.0
      %176 = vmatprep.subr.mxu0 0.0
      %177 = vmatpush1.xpose.msra.mxu0 0.0
      %178 = vmatprep.subr.mxu0 0.0
      %179 = vmatpush1.xpose.msra.mxu0 0.0
      %180 = vmatprep.subr.mxu0 0.0
      %181 = vmatpush1.xpose.msra.mxu0 0.0
      %182 = vmatprep.mubr.f32.mxu0 %v116
      %183 = vmatmul.mubr.f32.gmra.mrb[0].mxu0 %v41
      %v184 = vpop.f32.mrb[0].mxu0
      %v185 = vadd.f32 0.0, %v184
      %v186 = vpop.f32.mrb[0].mxu0
      %187 = vdwg.mxu0
      %vm188 = vcmask 27648
      %v189 = vsel %vm188, %v112, inf
      %190 = vmin.xlane.f32.xlu0 %v189
      %v191 = vpop.xlane.xlu0 %190
      %v192 = vsel %vm188, %v185, inf
      %193 = vmin.xlane.f32.xlu0 %v192
      %v194 = vpop.xlane.xlu0 %193
      %v195 = vsub.f32 %v191, %v112
      %v196 = vsub.f32 %v194, %v185
      %v197 = vmul.f32 %v195, 1.442695
      %v198 = vpow.pop %v197
      %v199 = vmul.f32 %v196, 1.442695
      %v200 = vpow.pop %v199
      %v201 = vsel %vm188, %v198, 0.0
      %202 = vadd.xlane.f32.xlu0 %v201
      %v203 = vpop.xlane.xlu0 %202
      %v204 = vsel %vm188, %v200, 0.0
      %205 = vadd.xlane.f32.xlu0 %v204
      %v206 = vpop.xlane.xlu0 %205
      %v207 = vrcp.pop %v203
      %v208 = vmul.f32 %v198, %v207
      %v209 = vrcp.pop %v206
      %v210 = vmul.f32 %v200, %v209
      %vm211 = vcmask 31744
      %v213 = vsel %vm211, %v208, 0
      %vm215 = vcmask 1043456
      %v216 = vsel %vm215, %v40, 0
      %v218 = vsel %vm215, %v43, 0
      %220 = vmatprep.subr.mxu0 %v218
      %221 = vmatpush1.msra.mxu0 %v216
      %222 = vmatprep.subr.mxu0 0.0
      %223 = vmatpush1.msra.mxu0 0.0
      %224 = vmatprep.subr.mxu0 0.0
      %225 = vmatpush1.msra.mxu0 0.0
      %226 = vmatprep.subr.mxu0 0.0
      %227 = vmatpush1.msra.mxu0 0.0
      %228 = vmatprep.subr.mxu0 0.0
      %229 = vmatpush1.msra.mxu0 0.0
      %230 = vmatprep.subr.mxu0 0.0
      %231 = vmatpush1.msra.mxu0 0.0
      %232 = vmatprep.subr.mxu0 0.0
      %233 = vmatpush1.msra.mxu0 0.0
      %234 = vmatprep.subr.mxu0 0.0
      %235 = vmatpush1.msra.mxu0 0.0
      %236 = vmatprep.subr.mxu0 0.0
      %237 = vmatpush1.msra.mxu0 0.0
      %238 = vmatprep.subr.mxu0 0.0
      %239 = vmatpush1.msra.mxu0 0.0
      %240 = vmatprep.subr.mxu0 0.0
      %241 = vmatpush1.msra.mxu0 0.0
      %242 = vmatprep.subr.mxu0 0.0
      %243 = vmatpush1.msra.mxu0 0.0
      %244 = vmatprep.subr.mxu0 0.0
      %245 = vmatpush1.msra.mxu0 0.0
      %246 = vmatprep.subr.mxu0 0.0
      %247 = vmatpush1.msra.mxu0 0.0
      %248 = vmatprep.subr.mxu0 0.0
      %249 = vmatpush1.msra.mxu0 0.0
      %250 = vmatprep.subr.mxu0 0.0
      %251 = vmatpush1.msra.mxu0 0.0
      %252 = vmatprep.subr.mxu0 0.0
      %253 = vmatpush1.msra.mxu0 0.0
      %254 = vmatprep.subr.mxu0 0.0
      %255 = vmatpush1.msra.mxu0 0.0
      %256 = vmatprep.subr.mxu0 0.0
      %257 = vmatpush1.msra.mxu0 0.0
      %258 = vmatprep.subr.mxu0 0.0
      %259 = vmatpush1.msra.mxu0 0.0
      %260 = vmatprep.subr.mxu0 0.0
      %261 = vmatpush1.msra.mxu0 0.0
      %262 = vmatprep.subr.mxu0 0.0
      %263 = vmatpush1.msra.mxu0 0.0
      %264 = vmatprep.subr.mxu0 0.0
      %265 = vmatpush1.msra.mxu0 0.0
      %266 = vmatprep.subr.mxu0 0.0
      %267 = vmatpush1.msra.mxu0 0.0
      %268 = vmatprep.subr.mxu0 0.0
      %269 = vmatpush1.msra.mxu0 0.0
      %270 = vmatprep.subr.mxu0 0.0
      %271 = vmatpush1.msra.mxu0 0.0
      %272 = vmatprep.subr.mxu0 0.0
      %273 = vmatpush1.msra.mxu0 0.0
      %274 = vmatprep.subr.mxu0 0.0
      %275 = vmatpush1.msra.mxu0 0.0
      %276 = vmatprep.subr.mxu0 0.0
      %277 = vmatpush1.msra.mxu0 0.0
      %278 = vmatprep.subr.mxu0 0.0
      %279 = vmatpush1.msra.mxu0 0.0
      %280 = vmatprep.subr.mxu0 0.0
      %281 = vmatpush1.msra.mxu0 0.0
      %282 = vmatprep.subr.mxu0 0.0
      %283 = vmatpush1.msra.mxu0 0.0
      %284 = vmatprep.mubr.f32.mxu0 0.0
      %285 = vmatmul.mubr.f32.gmra.mrb[0].mxu0 %v213
      %v286 = vpop.f32.mrb[0].mxu0
      %v287 = vadd.f32 0.0, %v286
      %v288 = vpop.f32.mrb[0].mxu0
      %v289 = vadd.f32 0.0, %v288
      %290 = vdwg.mxu0
      %v292 = vsel %vm211, %v210, 0
      %v294 = vsel %vm215, %v41, 0
      %v296 = vsel %vm215, %v116, 0
      %298 = vmatprep.subr.mxu0 %v296
      %299 = vmatpush1.msra.mxu0 %v294
      %300 = vmatprep.subr.mxu0 0.0
      %301 = vmatpush1.msra.mxu0 0.0
      %302 = vmatprep.subr.mxu0 0.0
      %303 = vmatpush1.msra.mxu0 0.0
      %304 = vmatprep.subr.mxu0 0.0
      %305 = vmatpush1.msra.mxu0 0.0
      %306 = vmatprep.subr.mxu0 0.0
      %307 = vmatpush1.msra.mxu0 0.0
      %308 = vmatprep.subr.mxu0 0.0
      %309 = vmatpush1.msra.mxu0 0.0
      %310 = vmatprep.subr.mxu0 0.0
      %311 = vmatpush1.msra.mxu0 0.0
      %312 = vmatprep.subr.mxu0 0.0
      %313 = vmatpush1.msra.mxu0 0.0
      %314 = vmatprep.subr.mxu0 0.0
      %315 = vmatpush1.msra.mxu0 0.0
      %316 = vmatprep.subr.mxu0 0.0
      %317 = vmatpush1.msra.mxu0 0.0
      %318 = vmatprep.subr.mxu0 0.0
      %319 = vmatpush1.msra.mxu0 0.0
      %320 = vmatprep.subr.mxu0 0.0
      %321 = vmatpush1.msra.mxu0 0.0
      %322 = vmatprep.subr.mxu0 0.0
      %323 = vmatpush1.msra.mxu0 0.0
      %324 = vmatprep.subr.mxu0 0.0
      %325 = vmatpush1.msra.mxu0 0.0
      %326 = vmatprep.subr.mxu0 0.0
      %327 = vmatpush1.msra.mxu0 0.0
      %328 = vmatprep.subr.mxu0 0.0
      %329 = vmatpush1.msra.mxu0 0.0
      %330 = vmatprep.subr.mxu0 0.0
      %331 = vmatpush1.msra.mxu0 0.0
      %332 = vmatprep.subr.mxu0 0.0
      %333 = vmatpush1.msra.mxu0 0.0
      %334 = vmatprep.subr.mxu0 0.0
      %335 = vmatpush1.msra.mxu0 0.0
      %336 = vmatprep.subr.mxu0 0.0
      %337 = vmatpush1.msra.mxu0 0.0
      %338 = vmatprep.subr.mxu0 0.0
      %339 = vmatpush1.msra.mxu0 0.0
      %340 = vmatprep.subr.mxu0 0.0
      %341 = vmatpush1.msra.mxu0 0.0
      %342 = vmatprep.subr.mxu0 0.0
      %343 = vmatpush1.msra.mxu0 0.0
      %344 = vmatprep.subr.mxu0 0.0
      %345 = vmatpush1.msra.mxu0 0.0
      %346 = vmatprep.subr.mxu0 0.0
      %347 = vmatpush1.msra.mxu0 0.0
      %348 = vmatprep.subr.mxu0 0.0
      %349 = vmatpush1.msra.mxu0 0.0
      %350 = vmatprep.subr.mxu0 0.0
      %351 = vmatpush1.msra.mxu0 0.0
      %352 = vmatprep.subr.mxu0 0.0
      %353 = vmatpush1.msra.mxu0 0.0
      %354 = vmatprep.subr.mxu0 0.0
      %355 = vmatpush1.msra.mxu0 0.0
      %356 = vmatprep.subr.mxu0 0.0
      %357 = vmatpush1.msra.mxu0 0.0
      %358 = vmatprep.subr.mxu0 0.0
      %359 = vmatpush1.msra.mxu0 0.0
      %360 = vmatprep.subr.mxu0 0.0
      %361 = vmatpush1.msra.mxu0 0.0
      %362 = vmatprep.mubr.f32.mxu0 0.0
      %363 = vmatmul.mubr.f32.gmra.mrb[0].mxu0 %v292
      %v364 = vpop.f32.mrb[0].mxu0
      %v365 = vadd.f32 0.0, %v364
      %v366 = vpop.f32.mrb[0].mxu0
      %v367 = vadd.f32 0.0, %v366
      %368 = vdwg.mxu0
      %v369 = vstv %s27
      %v370 = vmul.f32 %v369, %v287
      %v371 = vmul.f32 %v369, %v289
      %v372 = vmul.f32 %v369, %v365
      %v373 = vmul.f32 %v369, %v367
      %v374 = vadd.f32 %v370, %v40
      %v375 = vadd.f32 %v371, %v43
      %v376 = vadd.f32 %v372, %v41
      %v377 = vadd.f32 %v373, %v116
      %v382 = vcombine.low %v374, %v375
      %v383 = vcombine.low %v376, %v377
      %386 = vst [vmem:[#allocation6] sm:$0xff] %v382
      %387 = vst [vmem:[#allocation6 + $0x8] sm:$0xff] %v383
    $region21: #{tpu_custom_call.1} parent=1 // pred_fallthru
      _
    // Predicated region
    $region22: #{tpu_custom_call.1} parent=1 // pred_check
      _
    $region23: #{tpu_custom_call.1} parent=1 // pred_check_branch
      %389 = sbr.rel (0) target = $region25
    $region24: #{tpu_custom_call.1} parent=1 // pred_region
      %s391 = ssub.s32 256, 256
      %392 = vsyncadd [#allocation5], %s391
      %s393 = sshll.u32 [#allocation6], 4
      %s394 = int_to_ptr.vmem [resolvable:$true] %s393
      %399 = dma.vmem_to_hbm [thread:$0]  %s394, 256, %s2, [#allocation5], 128, 128, 8
    $region25: #{tpu_custom_call.1} parent=1 // pred_fallthru
      _
    // Predicated region
    $region26: #{tpu_custom_call.1} parent=1 // pred_check
      _
    $region27: #{tpu_custom_call.1} parent=1 // pred_check_branch
      %401 = sbr.rel (0) target = $region29
    $region28: #{tpu_custom_call.1} parent=1 // pred_region
      %402 = dma.done [#allocation5], 256
    $region29: #{tpu_custom_call.1} parent=1 // pred_fallthru
      _
    %403 = vsyncpa [#allocation4], 1
    %404 = vsyncpa [#allocation5], 1

</llo_original>
